<compile_context>
chip_gen: v6e
topology: v6e:2x2x1
jax: 0.10.0
libtpu: 0.0.40
codegen_flags: <defaults>
</compile_context>

<pallas_src>
import functools

import jax
import jax.numpy as jnp
from jax.experimental import pallas as pl
from jax.experimental.pallas import tpu as pltpu


def _round_up(x: int, m: int) -> int:
    return ((x + m - 1) // m) * m


def _sublane_multiple(dtype) -> int:
    itemsize = jnp.dtype(dtype).itemsize
    return {4: 8, 2: 16, 1: 32}.get(itemsize, 8)


# ---------------------------------------------------------------------------
# Path 1: units folded into N (best for small D_out; lane-dense MXU + stores).
# ---------------------------------------------------------------------------
def _maxout_folded_kernel(x_ref, w_ref, b_ref, o_ref, acc_ref, *,
                          num_units: int, n_per_unit: int):
    # x_ref: (bm, bk)   w_ref: (bk, NF)   b_ref: (1, NF) f32
    # o_ref: (bm, n_per_unit)             acc_ref: (bm, NF) f32 scratch
    k = pl.program_id(1)
    nk = pl.num_programs(1)

    partial = jnp.dot(x_ref[...], w_ref[...], preferred_element_type=jnp.float32)

    @pl.when(k == 0)
    def _():
        acc_ref[...] = b_ref[...] + partial        # bias-initialized accumulator

    @pl.when(k > 0)
    def _():
        acc_ref[...] += partial

    @pl.when(k == nk - 1)
    def _():
        acc = acc_ref[...]
        m = acc[:, :n_per_unit]
        for u in range(1, num_units):               # lane-aligned static slices
            m = jnp.maximum(m, acc[:, u * n_per_unit:(u + 1) * n_per_unit])
        o_ref[...] = m.astype(o_ref.dtype)


# ---------------------------------------------------------------------------
# Path 2: units as a grid axis (large D_out).
# ---------------------------------------------------------------------------
def _maxout_units_kernel(x_ref, w_ref, b_ref, o_ref, acc_mm, acc_max):
    # x_ref: (bm, bk)   w_ref: (1, bk, bn)   b_ref: (1, 1, bn) f32
    # o_ref: (bm, bn)   acc_mm/acc_max: (bm, bn) f32 scratch
    u = pl.program_id(2)
    k = pl.program_id(3)
    nu = pl.num_programs(2)
    nk = pl.num_programs(3)

    partial = jnp.dot(x_ref[...], w_ref[0], preferred_element_type=jnp.float32)

    @pl.when(k == 0)
    def _():
        acc_mm[...] = b_ref[0] + partial           # bias-initialized accumulator

    @pl.when(k > 0)
    def _():
        acc_mm[...] += partial

    @pl.when(k == nk - 1)
    def _():
        y_u = acc_mm[...]

        @pl.when(u == 0)
        def _():
            acc_max[...] = y_u                     # first unit: no -inf fill

        @pl.when(u > 0)
        def _():
            acc_max[...] = jnp.maximum(acc_max[...], y_u)

        @pl.when(u == nu - 1)
        def _():
            o_ref[...] = acc_max[...].astype(o_ref.dtype)


def maxout(x, w, b, *, block_m: int = 512, block_n: int = 1024,
           block_k: int = 512, max_single_k: int = 2048, max_fold_n: int = 2048,
           compute_dtype=jnp.bfloat16, fold_units=None):
    """x: (B, D_in), w: (num_units, D_in, D_out), b: (num_units, D_out)."""
    B, D_in = x.shape
    num_units, D_in_w, D_out = w.shape
    assert D_in_w == D_in and b.shape == (num_units, D_out)
    out_dtype = x.dtype

    compute_dtype = jnp.dtype(compute_dtype)
    sub = _sublane_multiple(compute_dtype)
    ci = compute_dtype.itemsize
    oi = jnp.dtype(out_dtype).itemsize

    # NOTE: in a real model the weight cast/pack below should be done once,
    # outside the per-step wrapper.
    xc = x.astype(compute_dtype)
    wc = w.astype(compute_dtype)
    bc = b.astype(jnp.float32)

    # --- common M / K tiling -------------------------------------------------
    bm = block_m if B >= block_m else _round_up(B, sub)
    Bp = _round_up(B, bm)
    if D_in <= max_single_k:
        bk, Kp = D_in, D_in          # single K step: no accumulator round-trip,
    else:                            # x block constant across the unit loop
        bk = min(block_k, D_in)
        Kp = _round_up(D_in, bk)
    m_tiles = Bp // bm
    k_tiles = Kp // bk

    n_per_unit = _round_up(D_out, 128)
    if fold_units is None:
        fold_units = num_units * n_per_unit <= max_fold_n

    if (Bp, Kp) != (B, D_in):
        xc = jnp.pad(xc, ((0, Bp - B), (0, Kp - D_in)))

    if fold_units:
        # ------------------------- folded path -------------------------------
        NF = num_units * n_per_unit
        wf = jnp.pad(wc, ((0, 0), (0, Kp - D_in), (0, n_per_unit - D_out)))
        wf = jnp.transpose(wf, (1, 0, 2)).reshape(Kp, NF)     # unit-major columns
        bf = jnp.pad(bc, ((0, 0), (0, n_per_unit - D_out))).reshape(1, NF)

        flops = 2 * B * D_in * D_out * num_units
        bytes_accessed = (Bp * Kp * ci                 # x streamed once
                          + Kp * NF * ci * m_tiles     # weights re-streamed per M tile
                          + NF * 4
                          + Bp * n_per_unit * oi)

        kernel = functools.partial(_maxout_folded_kernel,
                                   num_units=num_units, n_per_unit=n_per_unit)
        out = pl.pallas_call(
            kernel,
            out_shape=jax.ShapeDtypeStruct((Bp, n_per_unit), out_dtype),
            grid_spec=pltpu.PrefetchScalarGridSpec(
                num_scalar_prefetch=0,
                grid=(m_tiles, k_tiles),
                in_specs=[
                    pl.BlockSpec((bm, bk), lambda i, k: (i, k)),
                    pl.BlockSpec((bk, NF), lambda i, k: (k, 0)),
                    pl.BlockSpec((1, NF), lambda i, k: (0, 0)),
                ],
                out_specs=pl.BlockSpec((bm, n_per_unit), lambda i, k: (i, 0)),
                scratch_shapes=[pltpu.VMEM((bm, NF), jnp.float32)],
            ),
            compiler_params=pltpu.CompilerParams(
                dimension_semantics=("parallel", "arbitrary"),
                vmem_limit_bytes=48 * 1024 * 1024,
            ),
            cost_estimate=pl.CostEstimate(
                flops=flops, bytes_accessed=bytes_accessed, transcendentals=0),
        )(xc, wf, bf)
        return out[:B, :D_out]

    # --------------------------- units-on-grid path --------------------------
    bn = block_n if D_out >= block_n else _round_up(D_out, 128)
    Np = _round_up(D_out, bn)
    n_tiles = Np // bn
    # NOTE(v7x): megacore only helps when m_tiles * n_tiles >= 2; for tiny B a
    # smaller bn (more N tiles) keeps both TensorCores busy.

    if (Kp, Np) != (D_in, D_out):
        wc = jnp.pad(wc, ((0, 0), (0, Kp - D_in), (0, Np - D_out)))
    if Np != D_out:
        bc = jnp.pad(bc, ((0, 0), (0, Np - D_out)))
    bc = bc.reshape(num_units, 1, Np)

    flops = 2 * B * D_in * D_out * num_units
    x_passes = n_tiles * (num_units if k_tiles > 1 else 1)
    bytes_accessed = (Bp * Kp * ci * x_passes
                      + num_units * Kp * Np * ci * m_tiles
                      + num_units * Np * 4
                      + Bp * Np * oi)

    out = pl.pallas_call(
        _maxout_units_kernel,
        out_shape=jax.ShapeDtypeStruct((Bp, Np), out_dtype),
        grid_spec=pltpu.PrefetchScalarGridSpec(
            num_scalar_prefetch=0,
            grid=(m_tiles, n_tiles, num_units, k_tiles),
            in_specs=[
                pl.BlockSpec((bm, bk), lambda i, j, u, k: (i, k)),
                pl.BlockSpec((1, bk, bn), lambda i, j, u, k: (u, k, j)),
                pl.BlockSpec((1, 1, bn), lambda i, j, u, k: (u, 0, j)),
            ],
            out_specs=pl.BlockSpec((bm, bn), lambda i, j, u, k: (i, j)),
            scratch_shapes=[
                pltpu.VMEM((bm, bn), jnp.float32),   # per-unit K partial (bias-init)
                pltpu.VMEM((bm, bn), jnp.float32),   # running max over units
            ],
        ),
        compiler_params=pltpu.CompilerParams(
            dimension_semantics=("parallel", "parallel", "arbitrary", "arbitrary"),
            vmem_limit_bytes=48 * 1024 * 1024,
        ),
        cost_estimate=pl.CostEstimate(
            flops=flops, bytes_accessed=bytes_accessed, transcendentals=0),
    )(xc, wc, bc)
    return out[:B, :D_out]


def maxout_ref(x, w, b):
    # Pure-JAX f32 reference: max over units of x @ W_u + b_u
    y = jnp.einsum("bi,uio->ubo", x, w) + b[:, None, :]
    return jnp.max(y, axis=0)


def _check(name, out, ref, atol, rtol):
    assert out.shape == ref.shape, (name, out.shape, ref.shape)
    ok = jnp.allclose(out.astype(jnp.float32), ref, atol=atol, rtol=rtol)
    err = jnp.max(jnp.abs(out.astype(jnp.float32) - ref))
    assert bool(ok), f"{name}: mismatch vs reference (max abs err {err})"


if __name__ == "__main__":
    key = jax.random.PRNGKey(0)

    def make(k, B, D_in, D_out, num_units):
        kx, kw, kb = jax.random.split(k, 3)
        bound = 1.0 / (D_in ** 0.5)
        x = jax.random.normal(kx, (B, D_in), dtype=jnp.float32)
        w = jax.random.uniform(kw, (num_units, D_in, D_out),
                               minval=-bound, maxval=bound, dtype=jnp.float32)
        b = jax.random.uniform(kb, (num_units, D_out),
                               minval=-bound, maxval=bound, dtype=jnp.float32)
        return x, w, b

    k1, k2, k3 = jax.random.split(key, 3)

    # 1) Small config matching MaxOut(input_dim, output_dim, num_units=2):
    #    exercises the folded-units path (D_out < 128 -> lane-dense folded N).
    x, w, b = make(k1, B=8, D_in=32, D_out=32, num_units=2)
    out = jax.block_until_ready(maxout(x, w, b))
    _check("folded", out, maxout_ref(x, w, b), atol=3e-2, rtol=3e-2)

    # 2) Units-on-grid path with a multi-step K reduction (forced small bk).
    x, w, b = make(k2, B=16, D_in=256, D_out=160, num_units=3)
    out = jax.block_until_ready(
        maxout(x, w, b, fold_units=False, block_k=128, max_single_k=64))
    _check("units-grid", out, maxout_ref(x, w, b), atol=3e-2, rtol=3e-2)

    # 3) Folded path with a multi-step K reduction.
    x, w, b = make(k3, B=16, D_in=256, D_out=48, num_units=4)
    out = jax.block_until_ready(maxout(x, w, b, block_k=128, max_single_k=64))
    _check("folded-multiK", out, maxout_ref(x, w, b), atol=3e-2, rtol=3e-2)

    print("KERNEL_OK")
</pallas_src>

<mosaic_0001>
module attributes {stable_mosaic.version = 11 : i64} {
  func.func @_maxout_folded_kernel(%arg0: i32, %arg1: i32, %arg2: memref<16x32xbf16, #tpu.memory_space<vmem>>, %arg3: memref<32x256xbf16, #tpu.memory_space<vmem>>, %arg4: memref<1x256xf32, #tpu.memory_space<vmem>>, %arg5: memref<16x128xf32, #tpu.memory_space<vmem>>, %arg6: memref<16x256xf32, #tpu.memory_space<vmem>>) attributes {dimension_semantics = [#tpu.dimension_semantics<parallel>, #tpu.dimension_semantics<arbitrary>], iteration_bounds = array<i64: 1, 1>, scalar_prefetch = 0 : i64, scratch_operands = 1 : i64, tpu.core_type = #tpu.core_type<tc>, window_params = [{transform_indices = @transform_0, window_bounds = array<i64: 16, 32>}, {transform_indices = @transform_1, window_bounds = array<i64: 32, 256>}, {pipeline_mode = #tpu.pipeline_mode<synchronous>, transform_indices = @transform_2, window_bounds = array<i64: 1, 256>}, {transform_indices = @transform_3, window_bounds = array<i64: 16, 128>}]} {
    %c0 = arith.constant 0 : index
    %c0_0 = arith.constant 0 : index
    %0 = vector.load %arg2[%c0, %c0_0] : memref<16x32xbf16, #tpu.memory_space<vmem>>, vector<16x32xbf16>
    %c0_1 = arith.constant 0 : index
    %c0_2 = arith.constant 0 : index
    %1 = vector.load %arg3[%c0_1, %c0_2] : memref<32x256xbf16, #tpu.memory_space<vmem>>, vector<32x256xbf16>
    %cst = arith.constant dense<0.000000e+00> : vector<16x256xf32>
    %2 = tpu.matmul %0, %1, %cst {dimension_numbers = #tpu.dot_dimension_numbers<[1], [0], [0], [1], [0, 0, 1, 1], [], []>} : vector<16x32xbf16>, vector<32x256xbf16>, vector<16x256xf32> -> vector<16x256xf32>
    %c0_i32 = arith.constant 0 : i32
    %3 = arith.cmpi eq, %arg1, %c0_i32 : i32
    %4 = arith.extui %3 : i1 to i32
    %c0_i32_3 = arith.constant 0 : i32
    %5 = arith.cmpi ne, %4, %c0_i32_3 : i32
    scf.if %5 {
      %c0_8 = arith.constant 0 : index
      %c0_9 = arith.constant 0 : index
      %12 = vector.load %arg4[%c0_8, %c0_9] : memref<1x256xf32, #tpu.memory_space<vmem>>, vector<1x256xf32>
      %13 = vector.broadcast %12 : vector<1x256xf32> to vector<16x256xf32>
      %14 = arith.addf %13, %2 : vector<16x256xf32>
      %c0_10 = arith.constant 0 : index
      %c0_11 = arith.constant 0 : index
      %15 = vector.load %arg6[%c0_10, %c0_11] : memref<16x256xf32, #tpu.memory_space<vmem>>, vector<16x256xf32>
      tpu.vector_store %arg6[%c0_10, %c0_11], %14 {strides = array<i32>} : memref<16x256xf32, #tpu.memory_space<vmem>>, vector<16x256xf32>,
    } else {
    }
    %c0_i32_4 = arith.constant 0 : i32
    %6 = arith.cmpi sgt, %arg1, %c0_i32_4 : i32
    %7 = arith.extui %6 : i1 to i32
    %c0_i32_5 = arith.constant 0 : i32
    %8 = arith.cmpi ne, %7, %c0_i32_5 : i32
    scf.if %8 {
      %c0_8 = arith.constant 0 : index
      %c0_9 = arith.constant 0 : index
      %12 = vector.load %arg6[%c0_8, %c0_9] : memref<16x256xf32, #tpu.memory_space<vmem>>, vector<16x256xf32>
      %13 = arith.addf %12, %2 : vector<16x256xf32>
      %c0_10 = arith.constant 0 : index
      %c0_11 = arith.constant 0 : index
      %14 = vector.load %arg6[%c0_10, %c0_11] : memref<16x256xf32, #tpu.memory_space<vmem>>, vector<16x256xf32>
      tpu.vector_store %arg6[%c0_10, %c0_11], %13 {strides = array<i32>} : memref<16x256xf32, #tpu.memory_space<vmem>>, vector<16x256xf32>,
    } else {
    }
    %c0_i32_6 = arith.constant 0 : i32
    %9 = arith.cmpi eq, %arg1, %c0_i32_6 : i32
    %10 = arith.extui %9 : i1 to i32
    %c0_i32_7 = arith.constant 0 : i32
    %11 = arith.cmpi ne, %10, %c0_i32_7 : i32
    scf.if %11 {
      %c0_8 = arith.constant 0 : index
      %c0_9 = arith.constant 0 : index
      %12 = vector.load %arg6[%c0_8, %c0_9] : memref<16x256xf32, #tpu.memory_space<vmem>>, vector<16x256xf32>
      %13 = vector.extract_strided_slice %12 {offsets = [0, 0], sizes = [16, 128], strides = [1, 1]} : vector<16x256xf32> to vector<16x128xf32>
      %14 = vector.extract_strided_slice %12 {offsets = [0, 128], sizes = [16, 128], strides = [1, 1]} : vector<16x256xf32> to vector<16x128xf32>
      %15 = arith.maximumf %13, %14 : vector<16x128xf32>
      %c0_10 = arith.constant 0 : index
      %c0_11 = arith.constant 0 : index
      %16 = vector.load %arg5[%c0_10, %c0_11] : memref<16x128xf32, #tpu.memory_space<vmem>>, vector<16x128xf32>
      tpu.vector_store %arg5[%c0_10, %c0_11], %15 {strides = array<i32>} : memref<16x128xf32, #tpu.memory_space<vmem>>, vector<16x128xf32>,
    } else {
    }
    return
  }
  func.func @transform_0(%arg0: i32, %arg1: i32) -> (i32, i32) {
    %c0_i32 = arith.constant 0 : i32
    return %arg0, %arg1 : i32, i32
  }
  func.func @transform_1(%arg0: i32, %arg1: i32) -> (i32, i32) {
    %c0_i32 = arith.constant 0 : i32
    %c0_i32_0 = arith.constant 0 : i32
    return %arg1, %c0_i32 : i32, i32
  }
  func.func @transform_2(%arg0: i32, %arg1: i32) -> (i32, i32) {
    %c0_i32 = arith.constant 0 : i32
    %c0_i32_0 = arith.constant 0 : i32
    %c0_i32_1 = arith.constant 0 : i32
    return %c0_i32, %c0_i32_0 : i32, i32
  }
  func.func @transform_3(%arg0: i32, %arg1: i32) -> (i32, i32) {
    %c0_i32 = arith.constant 0 : i32
    %c0_i32_0 = arith.constant 0 : i32
    return %arg0, %c0_i32 : i32, i32
  }
}

</mosaic_0001>

<llo_original>
// kernel: tpu_custom_call.1
$region0: #{tpu_custom_call.1}
  #allocation0 [shape = 'u32[]', space=smem, size = 0x4, offset = 0x4, fixed_abs, tag = 'smem constant byte address 0x4 - core index']
  #allocation1 [shape = 'u32[144,128]{1,0:T(1,128)}', space=vmem, size = 0x12000, scoped, tag = 'internal scratch']
  #allocation2 [shape = 'f32[16,256]{1,0:T(8,128)}', space=vmem, size = 0x4000, scoped, tag = 'scratch operand']
  %s0 = inlined_call_operand.hbm [shape: bf16[16,32], index: 0, kind: input, shape index: {}]
  %s1 = inlined_call_operand.hbm [shape: bf16[32,256], index: 1, kind: input, shape index: {}]
  %s2 = inlined_call_operand.vmem [shape: f32[1,256], index: 2, kind: input, shape index: {}]
  %s3 = inlined_call_operand.hbm [shape: f32[16,128], index: 3, kind: output, shape index: {}]
  %s4 = sld [smem:[#allocation0]]
  $region42: #{tpu_custom_call.1} parent=0
    _
  %s6 = ssub.s32 1, %s4
  %s7 = scalar_select 0, %s6, %s4
  $region1: #{tpu_custom_call.1} parent=0
    #allocation3 [shape = 'u8[4096]{0}', space=vmem, size = 0x1000, scoped, tag = 'input window, operand 0, single buffered']
    #allocation4 [shape = 's32[1]{0}', space=sflag, size = 0x4, scoped, tag = 'scoped memory for tpu_custom_call.1']
    #allocation5 [shape = 's32[1]{0}', space=sflag, size = 0x4, scoped, tag = 'scoped memory for tpu_custom_call.1']
    #allocation6 [shape = 'u8[16384]{0}', space=vmem, size = 0x4000, scoped, tag = 'input window, operand 1, single buffered']
    #allocation7 [shape = 's32[1]{0}', space=sflag, size = 0x4, scoped, tag = 'scoped memory for tpu_custom_call.1']
    #allocation8 [shape = 'u8[8192]{0}', space=vmem, size = 0x2000, scoped, tag = 'output window, operand 0, single buffered']
    %8 = vsyncpa [#allocation4], 0
    %9 = vsyncpa [#allocation7], 0
    %10 = vsyncpa [#allocation5], 0
    // Predicated region
    $region2: #{tpu_custom_call.1} parent=1 // pred_check
      _
    $region3: #{tpu_custom_call.1} parent=1 // pred_check_branch
      %12 = sbr.rel (0) target = $region5
    $region4: #{tpu_custom_call.1} parent=1 // pred_region
      %s14 = ssub.s32 128, 128
      %15 = vsyncadd [#allocation4], %s14
      %s16 = sshll.u32 [#allocation3], 4
      %s17 = int_to_ptr.vmem [resolvable:$true] %s16
      %22 = dma.hbm_to_vmem [thread:$0]  %s0, 128, %s17, [#allocation4], 64, 64, 4
    $region5: #{tpu_custom_call.1} parent=1 // pred_fallthru
      _
    // Predicated region
    $region6: #{tpu_custom_call.1} parent=1 // pred_check
      _
    $region7: #{tpu_custom_call.1} parent=1 // pred_check_branch
      %24 = sbr.rel (0) target = $region9
    $region8: #{tpu_custom_call.1} parent=1 // pred_region
      %s26 = ssub.s32 512, 512
      %27 = vsyncadd [#allocation7], %s26
      %s28 = sshll.u32 [#allocation6], 4
      %s29 = int_to_ptr.vmem [resolvable:$true] %s28
      %34 = dma.hbm_to_vmem [thread:$0]  %s1, 512, %s29, [#allocation7], 128, 128, 8
    $region9: #{tpu_custom_call.1} parent=1 // pred_fallthru
      _
    // Predicated region
    $region10: #{tpu_custom_call.1} parent=1 // pred_check
      _
    $region11: #{tpu_custom_call.1} parent=1 // pred_check_branch
      %36 = sbr.rel (0) target = $region13
    $region12: #{tpu_custom_call.1} parent=1 // pred_region
      _
    $region13: #{tpu_custom_call.1} parent=1 // pred_fallthru
      _
    // Predicated region
    $region14: #{tpu_custom_call.1} parent=1 // pred_check
      _
    $region15: #{tpu_custom_call.1} parent=1 // pred_check_branch
      %38 = sbr.rel (0) target = $region17
    $region16: #{tpu_custom_call.1} parent=1 // pred_region
      %39 = dma.done [#allocation4], 128
    $region17: #{tpu_custom_call.1} parent=1 // pred_fallthru
      _
    // Predicated region
    $region18: #{tpu_custom_call.1} parent=1 // pred_check
      _
    $region19: #{tpu_custom_call.1} parent=1 // pred_check_branch
      %41 = sbr.rel (0) target = $region21
    $region20: #{tpu_custom_call.1} parent=1 // pred_region
      %42 = dma.done [#allocation7], 512
    $region21: #{tpu_custom_call.1} parent=1 // pred_fallthru
      _
    %v44 = vld [vmem:[#allocation3] sm:$0xf]
    %v45 = vld [vmem:[#allocation3 + $0x4] sm:$0xf]
    %v46 = vld [vmem:[#allocation6] sm:$0xff]
    %v47 = vld [vmem:[#allocation6 + $0x8] sm:$0xff]
    %v48 = vld [vmem:[#allocation6 + $0x10] sm:$0xff]
    %v49 = vld [vmem:[#allocation6 + $0x18] sm:$0xff]
    %v52 = vunpack.c.l.b16 %v44
    %v53 = vunpack.c.l.b16 %v45
    %v54 = vpack.c.b16 %v53, %v52
    %v59 = vunpack.c.l.b16 %v46
    %v60 = vunpack.c.h.b16 %v46
    %v61 = vunpack.c.l.b16 %v47
    %v62 = vunpack.c.h.b16 %v47
    %v63 = vunpack.c.l.b16 %v48
    %v64 = vunpack.c.h.b16 %v48
    %v65 = vunpack.c.l.b16 %v49
    %v66 = vunpack.c.h.b16 %v49
    %v67 = vpack.c.b16 %v61, %v59
    %v68 = vpack.c.b16 %v62, %v60
    %v69 = vpack.c.b16 %v65, %v63
    %v70 = vpack.c.b16 %v66, %v64
    %vm75 = vcmask 261120
    %v77 = vsel %vm75, %v54, 0
    %79 = vmatprep.subr.bf16.mxu0 0
    %80 = vmatpush1.bf16.msra.mxu0 0
    %81 = vmatprep.subr.bf16.mxu0 0
    %82 = vmatpush1.bf16.msra.mxu0 0
    %83 = vmatprep.subr.bf16.mxu0 0
    %84 = vmatpush1.bf16.msra.mxu0 0
    %85 = vmatprep.subr.bf16.mxu0 0
    %86 = vmatpush1.bf16.msra.mxu0 0
    %87 = vmatprep.subr.bf16.mxu0 0
    %88 = vmatpush1.bf16.msra.mxu0 0
    %89 = vmatprep.subr.bf16.mxu0 0
    %90 = vmatpush1.bf16.msra.mxu0 0
    %91 = vmatprep.subr.bf16.mxu0 %v70
    %92 = vmatpush1.bf16.msra.mxu0 %v69
    %93 = vmatprep.subr.bf16.mxu0 %v68
    %94 = vmatpush1.bf16.msra.mxu0 %v67
    %95 = vmatprep.subr.bf16.mxu0 0
    %96 = vmatpush2.bf16.msra.mxu0 0
    %97 = vmatprep.subr.bf16.mxu0 0
    %98 = vmatpush2.bf16.msra.mxu0 0
    %99 = vmatprep.subr.bf16.mxu0 0
    %100 = vmatpush2.bf16.msra.mxu0 0
    %101 = vmatprep.subr.bf16.mxu0 0
    %102 = vmatpush2.bf16.msra.mxu0 0
    %103 = vmatprep.subr.bf16.mxu0 0
    %104 = vmatpush2.bf16.msra.mxu0 0
    %105 = vmatprep.subr.bf16.mxu0 0
    %106 = vmatpush2.bf16.msra.mxu0 0
    %107 = vmatprep.subr.bf16.mxu0 0
    %108 = vmatpush2.bf16.msra.mxu0 0
    %109 = vmatprep.subr.bf16.mxu0 0
    %110 = vmatpush2.bf16.msra.mxu0 0
    %111 = vmatprep.mubr.bf16.mxu0 0
    %112 = vmatmul.mubr.bf16.gmra.mxu0 %v77
    %v113 = vpop.f32.mrf.mxu0
    %v114 = vadd.f32 0.0, %v113
    %v115 = vpop.f32.mrf.mxu0
    %v116 = vadd.f32 0.0, %v115
    %v117 = vpop.f32.mrf.mxu0
    %v118 = vadd.f32 0.0, %v117
    %v119 = vpop.f32.mrf.mxu0
    %v120 = vadd.f32 0.0, %v119
    %121 = vdwg.mxu0
    %p122 = scmp.eq.s32.totalorder 0, 0
    // Predicated region
    $region22: #{tpu_custom_call.1} parent=1 // pred_check
      %p123 = pneg %p122
    $region23: #{tpu_custom_call.1} parent=1 // pred_check_branch
      %125 = sbr.rel (%p123) target = $region25
    $region24: #{tpu_custom_call.1} parent=1 // pred_region
      %v126 = vld [vmem:[%s2] sm:$0x3]
      %v128 = vlaneseq
      %v129 = vshrl.u32 %v128, 7
      %v130 = vsub.s32 0, %v129
      %v131 = vrot.slane %v126, %v130
      %v132 = vlaneseq
      %v133 = vshrl.u32 %v132, 7
      %v134 = vsub.s32 1, %v133
      %v135 = vrot.slane %v126, %v134
      %v138 = vadd.f32 %v131, %v114
      %v139 = vadd.f32 %v135, %v116
      %v140 = vadd.f32 %v131, %v118
      %v141 = vadd.f32 %v135, %v120
      %142 = vst [vmem:[#allocation2] sm:$0xff] %v138
      %143 = vst [vmem:[#allocation2 + $0x8] sm:$0xff] %v139
      %144 = vst [vmem:[#allocation2 + $0x10] sm:$0xff] %v140
      %145 = vst [vmem:[#allocation2 + $0x18] sm:$0xff] %v141
    $region25: #{tpu_custom_call.1} parent=1 // pred_fallthru
      _
    %p146 = scmp.gt.s32.totalorder 0, 0
    // Predicated region
    $region26: #{tpu_custom_call.1} parent=1 // pred_check
      %p147 = pneg %p146
    $region27: #{tpu_custom_call.1} parent=1 // pred_check_branch
      %149 = sbr.rel (%p147) target = $region29
    $region28: #{tpu_custom_call.1} parent=1 // pred_region
      %v150 = vld [vmem:[#allocation2] sm:$0xff]
      %v151 = vld [vmem:[#allocation2 + $0x8] sm:$0xff]
      %v152 = vld [vmem:[#allocation2 + $0x10] sm:$0xff]
      %v153 = vld [vmem:[#allocation2 + $0x18] sm:$0xff]
      %v154 = vadd.f32 %v150, %v114
      %v155 = vadd.f32 %v151, %v116
      %v156 = vadd.f32 %v152, %v118
      %v157 = vadd.f32 %v153, %v120
      %158 = vst [vmem:[#allocation2] sm:$0xff] %v154
      %159 = vst [vmem:[#allocation2 + $0x8] sm:$0xff] %v155
      %160 = vst [vmem:[#allocation2 + $0x10] sm:$0xff] %v156
      %161 = vst [vmem:[#allocation2 + $0x18] sm:$0xff] %v157
    $region29: #{tpu_custom_call.1} parent=1 // pred_fallthru
      _
    // Predicated region
    $region30: #{tpu_custom_call.1} parent=1 // pred_check
      %p162 = pneg %p122
    $region31: #{tpu_custom_call.1} parent=1 // pred_check_branch
      %164 = sbr.rel (%p162) target = $region33
    $region32: #{tpu_custom_call.1} parent=1 // pred_region
      %v165 = vld [vmem:[#allocation2] sm:$0xff]
      %v166 = vld [vmem:[#allocation2 + $0x8] sm:$0xff]
      %v167 = vld [vmem:[#allocation2 + $0x10] sm:$0xff]
      %v168 = vld [vmem:[#allocation2 + $0x18] sm:$0xff]
      %v169 = vmax.f32 %v165, %v166
      %v170 = vmax.f32 %v167, %v168
      %171 = vst [vmem:[#allocation8] sm:$0xff] %v169
      %172 = vst [vmem:[#allocation8 + $0x8] sm:$0xff] %v170
    $region33: #{tpu_custom_call.1} parent=1 // pred_fallthru
      _
    // Predicated region
    $region34: #{tpu_custom_call.1} parent=1 // pred_check
      _
    $region35: #{tpu_custom_call.1} parent=1 // pred_check_branch
      %174 = sbr.rel (0) target = $region37
    $region36: #{tpu_custom_call.1} parent=1 // pred_region
      %s176 = ssub.s32 256, 256
      %177 = vsyncadd [#allocation5], %s176
      %s178 = sshll.u32 [#allocation8], 4
      %s179 = int_to_ptr.vmem [resolvable:$true] %s178
      %184 = dma.vmem_to_hbm [thread:$0]  %s179, 256, %s3, [#allocation5], 128, 128, 8
    $region37: #{tpu_custom_call.1} parent=1 // pred_fallthru
      _
    // Predicated region
    $region38: #{tpu_custom_call.1} parent=1 // pred_check
      _
    $region39: #{tpu_custom_call.1} parent=1 // pred_check_branch
      %186 = sbr.rel (0) target = $region41
    $region40: #{tpu_custom_call.1} parent=1 // pred_region
      %187 = dma.done [#allocation5], 256
    $region41: #{tpu_custom_call.1} parent=1 // pred_fallthru
      _
    %188 = vsyncpa [#allocation4], 1
    %189 = vsyncpa [#allocation7], 1
    %190 = vsyncpa [#allocation5], 1

</llo_original>
